<compile_context>
chip_gen: v6e
topology: v6e:2x2x1
jax: 0.10.0
libtpu: 0.0.40
codegen_flags: <defaults>
</compile_context>

<pallas_src>
import jax
import jax.numpy as jnp
import numpy as np
from jax.experimental import pallas as pl
from jax.experimental.pallas import tpu as pltpu

EPS = 1e-3


def _dma_copy_kernel(x_hbm, o_hbm, sem):
    # One HBM->HBM DMA of the whole array: no VMEM staging, no grid steps.
    cp = pltpu.make_async_copy(x_hbm, o_hbm, sem)
    cp.start()
    cp.wait()


def acn_forward(x, w=None, bias=None, eps=EPS, use_kernel=True):
    """Forward pass of Acn.

    `w` (C,) and `bias` (1,) are the nn.Conv2d(C, 1, 1) parameters; they are
    accepted for API parity but unused: the reference reassigns `out = x`, so
    the attention-normalization path is dead code and the module output is
    exactly `x`.
    """
    del w, bias, eps  # dead in the reference forward

    if not use_kernel:
        # Fastest possible implementation of the module: no custom call,
        # no HBM traffic.
        return x

    # Single HBM->HBM DMA copy (the HBM read+write is the floor for any
    # kernel that must produce a distinct output buffer).
    return pl.pallas_call(
        _dma_copy_kernel,
        out_shape=jax.ShapeDtypeStruct(x.shape, x.dtype),
        in_specs=[pl.BlockSpec(memory_space=pl.ANY)],
        out_specs=pl.BlockSpec(memory_space=pl.ANY),
        scratch_shapes=[pltpu.SemaphoreType.DMA(())],
    )(x)


if __name__ == "__main__":
    key = jax.random.PRNGKey(0)
    kx, kw, kb = jax.random.split(key, 3)

    B, C, H, W = 2, 4, 16, 16
    x = jax.random.normal(kx, (B, C, H, W), dtype=jnp.float32)

    # nn.Conv2d(C, 1, 1) params: weight (1, C, 1, 1) -> (C,), bias (1,).
    w = jax.random.normal(kw, (C,), dtype=jnp.float32) * 0.1
    bias = jax.random.normal(kb, (1,), dtype=jnp.float32) * 0.1

    acn = jax.jit(acn_forward)
    out = jax.block_until_ready(acn(x, w, bias))

    # Reference semantics: output is exactly x.
    assert out.shape == x.shape
    assert out.dtype == x.dtype
    np.testing.assert_array_equal(jax.device_get(out), jax.device_get(x))

    # Also exercise the zero-cost path (no kernel) for parity.
    out_fast = jax.block_until_ready(acn_forward(x, w, bias, use_kernel=False))
    np.testing.assert_array_equal(jax.device_get(out_fast), jax.device_get(x))

    print("KERNEL_OK")
</pallas_src>

<mosaic_0001>
module attributes {stable_mosaic.version = 11 : i64} {
  func.func @_dma_copy_kernel(%arg0: memref<2x4x16x16xf32, #tpu.memory_space<any>>, %arg1: memref<2x4x16x16xf32, #tpu.memory_space<any>>, %arg2: memref<!tpu.dma_semaphore, #tpu.memory_space<semaphore_mem>>) attributes {dimension_semantics = [], scalar_prefetch = 0 : i64, scratch_operands = 1 : i64, tpu.core_type = #tpu.core_type<tc>} {
    tpu.enqueue_dma source(%arg0 : memref<2x4x16x16xf32, #tpu.memory_space<any>>) target(%arg1 : memref<2x4x16x16xf32, #tpu.memory_space<any>>) target_semaphore(%arg2 : memref<!tpu.dma_semaphore, #tpu.memory_space<semaphore_mem>>)
    tpu.wait_dma2 semaphore(%arg2 : memref<!tpu.dma_semaphore, #tpu.memory_space<semaphore_mem>>) src(%arg0 : memref<2x4x16x16xf32, #tpu.memory_space<any>>) dst(%arg1 : memref<2x4x16x16xf32, #tpu.memory_space<any>>)
    return
  }
}

</mosaic_0001>

<llo_original>
// kernel: acn_forward.1
$region0: #{acn_forward.1}
  #allocation0 [shape = 'u32[]', space=smem, size = 0x4, offset = 0x4, fixed_abs, tag = 'smem constant byte address 0x4 - core index']
  #allocation1 [shape = 'u32[144,128]{1,0:T(1,128)}', space=vmem, size = 0x12000, scoped, tag = 'internal scratch']
  #allocation2 [shape = 's32[1]{0}', space=sflag, size = 0x4, scoped, tag = 'scratch operand']
  #allocation3 [shape = 's32[]', space=sflag, size = 0x4, offset = 0, fixed_abs, tag = 'sflag constant byte address 0x0 - dummy sync flag']
  #allocation4 [shape = 'u32[0]{0}', space=smem, size = 0, offset = 0, fixed_abs, tag = 'smem constant byte address 0x0 - null']
  %s0 = inlined_call_operand.hbm [shape: f32[2,4,16,16], index: 0, kind: input, shape index: {}]
  %s1 = inlined_call_operand.hbm [shape: f32[2,4,16,16], index: 1, kind: output, shape index: {}]
  %s2 = sld [smem:[#allocation0]]
  $region2: #{acn_forward.1} parent=0
    _
  %s4 = ssub.s32 1, %s2
  %s5 = scalar_select 0, %s4, %s2
  %s7 = sshll.u32 1, 14
  %s8 = sxor.u32 4294967295, %s7
  %12 = dma.general %s0, 2048, %s1, [#allocation2], 131072, [#allocation4], 0, 0
  %s13 = smul.u32 2, 4
  %s14 = smul.u32 %s13, 16
  %s15 = smul.u32 %s14, 1
  %s16 = sshll.u32 %s15, 4
  %17 = dma.done [#allocation2], %s16
  %18 = vsyncmov [#allocation2]
  %s19 = vpop.sfrf %18
  %p20 = scmp.eq.s32.totalorder %s19, 0
  %p21 = pneg %p20
  %23 = shalt.err (%p21)

</llo_original>
